<compile_context>
chip_gen: v6e
topology: v6e:2x2x1
jax: 0.10.0
libtpu: 0.0.40
codegen_flags: <defaults>
</compile_context>

<pallas_src>
import jax
import jax.numpy as jnp
from jax.experimental import pallas as pl
from jax.experimental.pallas import tpu as pltpu


def _linear_kernel(x_ref, w_ref, b_ref, o_ref):
    # MXU matmul with f32 accumulation; bias add + cast stay in f32 on the VPU.
    acc = jnp.dot(x_ref[...], w_ref[...], preferred_element_type=jnp.float32)
    bias = b_ref[...]  # read once per tile; broadcast over the batch rows
    o_ref[...] = (acc + bias).astype(o_ref.dtype)


def custom_linear(x, w_t, b, *, block_b=1024, compute_dtype=None):
    """y = x @ w_t + b.

    x:   [B, 64]  float32
    w_t: [64, 4]  float32 (nn.Linear weight, transposed)
    b:   [1, 4]   float32
    compute_dtype: optionally cast x / w_t (e.g. jnp.bfloat16) at the kernel
                   boundary to halve HBM traffic; accumulation stays f32.
    """
    B, K = x.shape
    Kw, N = w_t.shape
    assert Kw == K
    out_dtype = x.dtype

    if compute_dtype is not None:
        x = x.astype(compute_dtype)
        w_t = w_t.astype(compute_dtype)
    b = b.astype(jnp.float32)  # post-MXU math stays f32 (no bf16 VPU on v5e)

    # Batch tile: multiple of 8 (sublane), capped so 2 input buffers + output
    # tile stay well under every generation's scoped VMEM limit.
    tb = min(int(block_b), max(8, ((B + 7) // 8) * 8))
    tb = ((tb + 7) // 8) * 8

    padded_b = ((B + tb - 1) // tb) * tb
    if padded_b != B:
        x = jnp.pad(x, ((0, padded_b - B), (0, 0)))

    y = pl.pallas_call(
        _linear_kernel,
        out_shape=jax.ShapeDtypeStruct((padded_b, N), out_dtype),
        grid_spec=pltpu.PrefetchScalarGridSpec(
            num_scalar_prefetch=0,
            grid=(padded_b // tb,),
            in_specs=[
                pl.BlockSpec((tb, K), lambda i: (i, 0)),   # tiled batch rows
                pl.BlockSpec((K, N), lambda i: (0, 0)),    # resident weights
                pl.BlockSpec((1, N), lambda i: (0, 0)),    # resident bias row
            ],
            out_specs=pl.BlockSpec((tb, N), lambda i: (i, 0)),
        ),
        compiler_params=pltpu.CompilerParams(
            # batch tiles are independent -> shard across v7x's two TCs
            dimension_semantics=("parallel",)),
    )(x, w_t, b)

    if padded_b != B:
        y = y[:B]
    return y


if __name__ == "__main__":
    key = jax.random.PRNGKey(0)
    kx, kw, kb, kx2 = jax.random.split(key, 4)

    IN_F, OUT_F = 64, 4  # nn.Linear(64, 4)

    # Deterministic parameter init (uniform, same scale as PyTorch default).
    bound = 1.0 / (IN_F ** 0.5)
    weight = jax.random.uniform(kw, (OUT_F, IN_F), jnp.float32, -bound, bound)
    bias = jax.random.uniform(kb, (OUT_F,), jnp.float32, -bound, bound)
    w_t = weight.T                   # [64, 4]
    b2d = bias.reshape(1, OUT_F)     # [1, 4]

    # --- small batch, f32 path (bit-close to nn.Linear semantics) ---
    B1 = 8
    x1 = jax.random.normal(kx, (B1, IN_F), jnp.float32)
    y1 = jax.block_until_ready(custom_linear(x1, w_t, b2d))
    y1_ref = x1 @ w_t + b2d
    assert y1.shape == (B1, OUT_F)
    assert jnp.allclose(y1, y1_ref, atol=1e-5, rtol=1e-5)

    # --- ragged batch (exercises tile padding) + bf16 MXU-input path ---
    B2 = 100
    x2 = jax.random.normal(kx2, (B2, IN_F), jnp.float32)
    y2 = jax.block_until_ready(
        custom_linear(x2, w_t, b2d, compute_dtype=jnp.bfloat16))
    y2_ref = x2 @ w_t + b2d
    assert y2.shape == (B2, OUT_F)
    assert y2.dtype == jnp.float32
    assert jnp.allclose(y2, y2_ref, atol=3e-2, rtol=3e-2)

    print("KERNEL_OK")
</pallas_src>

<mosaic_0001>
module attributes {stable_mosaic.version = 11 : i64} {
  func.func @_linear_kernel(%arg0: i32, %arg1: memref<8x64xf32, #tpu.memory_space<vmem>>, %arg2: memref<64x4xf32, #tpu.memory_space<vmem>>, %arg3: memref<1x4xf32, #tpu.memory_space<vmem>>, %arg4: memref<8x4xf32, #tpu.memory_space<vmem>>) attributes {dimension_semantics = [#tpu.dimension_semantics<parallel>], iteration_bounds = array<i64: 1>, scalar_prefetch = 0 : i64, scratch_operands = 0 : i64, tpu.core_type = #tpu.core_type<tc>, window_params = [{transform_indices = @transform_0, window_bounds = array<i64: 8, 64>}, {pipeline_mode = #tpu.pipeline_mode<synchronous>, transform_indices = @transform_1, window_bounds = array<i64: 64, 4>}, {pipeline_mode = #tpu.pipeline_mode<synchronous>, transform_indices = @transform_2, window_bounds = array<i64: 1, 4>}, {transform_indices = @transform_3, window_bounds = array<i64: 8, 4>}]} {
    %c0 = arith.constant 0 : index
    %c0_0 = arith.constant 0 : index
    %0 = vector.load %arg1[%c0, %c0_0] : memref<8x64xf32, #tpu.memory_space<vmem>>, vector<8x64xf32>
    %c0_1 = arith.constant 0 : index
    %c0_2 = arith.constant 0 : index
    %1 = vector.load %arg2[%c0_1, %c0_2] : memref<64x4xf32, #tpu.memory_space<vmem>>, vector<64x4xf32>
    %cst = arith.constant dense<0.000000e+00> : vector<8x4xf32>
    %2 = tpu.matmul %0, %1, %cst {dimension_numbers = #tpu.dot_dimension_numbers<[1], [0], [0], [1], [0, 0, 1, 1], [], []>} : vector<8x64xf32>, vector<64x4xf32>, vector<8x4xf32> -> vector<8x4xf32>
    %c0_3 = arith.constant 0 : index
    %c0_4 = arith.constant 0 : index
    %3 = vector.load %arg3[%c0_3, %c0_4] : memref<1x4xf32, #tpu.memory_space<vmem>>, vector<1x4xf32>
    %4 = vector.broadcast %3 : vector<1x4xf32> to vector<8x4xf32>
    %5 = arith.addf %2, %4 : vector<8x4xf32>
    %c0_5 = arith.constant 0 : index
    %c0_6 = arith.constant 0 : index
    %6 = vector.load %arg4[%c0_5, %c0_6] : memref<8x4xf32, #tpu.memory_space<vmem>>, vector<8x4xf32>
    tpu.vector_store %arg4[%c0_5, %c0_6], %5 {strides = array<i32>} : memref<8x4xf32, #tpu.memory_space<vmem>>, vector<8x4xf32>,
    return
  }
  func.func @transform_0(%arg0: i32) -> (i32, i32) {
    %c0_i32 = arith.constant 0 : i32
    %c0_i32_0 = arith.constant 0 : i32
    return %arg0, %c0_i32 : i32, i32
  }
  func.func @transform_1(%arg0: i32) -> (i32, i32) {
    %c0_i32 = arith.constant 0 : i32
    %c0_i32_0 = arith.constant 0 : i32
    %c0_i32_1 = arith.constant 0 : i32
    return %c0_i32, %c0_i32_0 : i32, i32
  }
  func.func @transform_2(%arg0: i32) -> (i32, i32) {
    %c0_i32 = arith.constant 0 : i32
    %c0_i32_0 = arith.constant 0 : i32
    %c0_i32_1 = arith.constant 0 : i32
    return %c0_i32, %c0_i32_0 : i32, i32
  }
  func.func @transform_3(%arg0: i32) -> (i32, i32) {
    %c0_i32 = arith.constant 0 : i32
    %c0_i32_0 = arith.constant 0 : i32
    return %arg0, %c0_i32 : i32, i32
  }
}

</mosaic_0001>

<llo_original>
// kernel: tpu_custom_call.1
$region0: #{tpu_custom_call.1}
  #allocation0 [shape = 'u32[]', space=smem, size = 0x4, offset = 0x4, fixed_abs, tag = 'smem constant byte address 0x4 - core index']
  #allocation1 [shape = 'u32[144,128]{1,0:T(1,128)}', space=vmem, size = 0x12000, scoped, tag = 'internal scratch']
  %s0 = inlined_call_operand.vmem [shape: f32[8,64], index: 0, kind: input, shape index: {}]
  %s1 = inlined_call_operand.vmem [shape: f32[64,4], index: 1, kind: input, shape index: {}]
  %s2 = inlined_call_operand.vmem [shape: f32[1,4], index: 2, kind: input, shape index: {}]
  %s3 = inlined_call_operand.vmem [shape: f32[8,4], index: 3, kind: output, shape index: {}]
  %s4 = sld [smem:[#allocation0]]
  $region22: #{tpu_custom_call.1} parent=0
    _
  %s6 = ssub.s32 1, %s4
  %s7 = scalar_select 0, %s6, %s4
  // Predicated region
  $region2: #{tpu_custom_call.1} parent=0 // pred_check
    _
  $region3: #{tpu_custom_call.1} parent=0 // pred_check_branch
    %9 = sbr.rel (0) target = $region5
  $region4: #{tpu_custom_call.1} parent=0 // pred_region
    _
  $region5: #{tpu_custom_call.1} parent=0 // pred_fallthru
    _
  // Predicated region
  $region6: #{tpu_custom_call.1} parent=0 // pred_check
    _
  $region7: #{tpu_custom_call.1} parent=0 // pred_check_branch
    %11 = sbr.rel (0) target = $region9
  $region8: #{tpu_custom_call.1} parent=0 // pred_region
    _
  $region9: #{tpu_custom_call.1} parent=0 // pred_fallthru
    _
  // Predicated region
  $region10: #{tpu_custom_call.1} parent=0 // pred_check
    _
  $region11: #{tpu_custom_call.1} parent=0 // pred_check_branch
    %13 = sbr.rel (0) target = $region13
  $region12: #{tpu_custom_call.1} parent=0 // pred_region
    _
  $region13: #{tpu_custom_call.1} parent=0 // pred_fallthru
    _
  %v14 = vld [vmem:[%s0] sm:$0xff]
  %v15 = vld [vmem:[%s1] sm:$0xff]
  %v16 = vld [vmem:[%s1 + $0x8] sm:$0xff]
  %v17 = vld [vmem:[%s1 + $0x10] sm:$0xff]
  %v18 = vld [vmem:[%s1 + $0x18] sm:$0xff]
  %v19 = vld [vmem:[%s1 + $0x20] sm:$0xff]
  %v20 = vld [vmem:[%s1 + $0x28] sm:$0xff]
  %v21 = vld [vmem:[%s1 + $0x30] sm:$0xff]
  %v22 = vld [vmem:[%s1 + $0x38] sm:$0xff]
  %v23 = vld [vmem:[%s2] sm:$0x1]
  %v25 = vlaneseq
  %v26 = vshrl.u32 %v25, 7
  %v27 = vsub.s32 0, %v26
  %v28 = vrot.slane %v23, %v27
  %vm30 = vcmask 523264
  %v32 = vsel %vm30, %v14, 0
  %34 = vmatprep.subr.mxu0 0.0
  %35 = vmatpush1.msra.mxu0 0.0
  %36 = vmatprep.subr.mxu0 0.0
  %37 = vmatpush1.msra.mxu0 0.0
  %38 = vmatprep.subr.mxu0 0.0
  %39 = vmatpush1.msra.mxu0 0.0
  %40 = vmatprep.subr.mxu0 0.0
  %41 = vmatpush1.msra.mxu0 0.0
  %42 = vmatprep.subr.mxu0 0.0
  %43 = vmatpush1.msra.mxu0 0.0
  %44 = vmatprep.subr.mxu0 0.0
  %45 = vmatpush1.msra.mxu0 0.0
  %46 = vmatprep.subr.mxu0 0.0
  %47 = vmatpush1.msra.mxu0 0.0
  %48 = vmatprep.subr.mxu0 0.0
  %49 = vmatpush1.msra.mxu0 0.0
  %50 = vmatprep.subr.mxu0 0.0
  %51 = vmatpush1.msra.mxu0 %v22
  %52 = vmatprep.subr.mxu0 0.0
  %53 = vmatpush1.msra.mxu0 %v21
  %54 = vmatprep.subr.mxu0 0.0
  %55 = vmatpush1.msra.mxu0 %v20
  %56 = vmatprep.subr.mxu0 0.0
  %57 = vmatpush1.msra.mxu0 %v19
  %58 = vmatprep.subr.mxu0 0.0
  %59 = vmatpush1.msra.mxu0 %v18
  %60 = vmatprep.subr.mxu0 0.0
  %61 = vmatpush1.msra.mxu0 %v17
  %62 = vmatprep.subr.mxu0 0.0
  %63 = vmatpush1.msra.mxu0 %v16
  %64 = vmatprep.subr.mxu0 0.0
  %65 = vmatpush1.msra.mxu0 %v15
  %66 = vmatprep.subr.mxu0 0.0
  %67 = vmatpush2.msra.mxu0 0.0
  %68 = vmatprep.subr.mxu0 0.0
  %69 = vmatpush2.msra.mxu0 0.0
  %70 = vmatprep.subr.mxu0 0.0
  %71 = vmatpush2.msra.mxu0 0.0
  %72 = vmatprep.subr.mxu0 0.0
  %73 = vmatpush2.msra.mxu0 0.0
  %74 = vmatprep.subr.mxu0 0.0
  %75 = vmatpush2.msra.mxu0 0.0
  %76 = vmatprep.subr.mxu0 0.0
  %77 = vmatpush2.msra.mxu0 0.0
  %78 = vmatprep.subr.mxu0 0.0
  %79 = vmatpush2.msra.mxu0 0.0
  %80 = vmatprep.subr.mxu0 0.0
  %81 = vmatpush2.msra.mxu0 0.0
  %82 = vmatprep.subr.mxu0 0.0
  %83 = vmatpush2.msra.mxu0 0.0
  %84 = vmatprep.subr.mxu0 0.0
  %85 = vmatpush2.msra.mxu0 0.0
  %86 = vmatprep.subr.mxu0 0.0
  %87 = vmatpush2.msra.mxu0 0.0
  %88 = vmatprep.subr.mxu0 0.0
  %89 = vmatpush2.msra.mxu0 0.0
  %90 = vmatprep.subr.mxu0 0.0
  %91 = vmatpush2.msra.mxu0 0.0
  %92 = vmatprep.subr.mxu0 0.0
  %93 = vmatpush2.msra.mxu0 0.0
  %94 = vmatprep.subr.mxu0 0.0
  %95 = vmatpush2.msra.mxu0 0.0
  %96 = vmatprep.subr.mxu0 0.0
  %97 = vmatpush2.msra.mxu0 0.0
  %98 = vmatprep.mubr.f32.mxu0 0.0
  %99 = vmatmul.mubr.f32.gmra.mxu0 %v32
  %v100 = vpop.f32.mrf.mxu0
  %v101 = vadd.f32 %v28, %v100
  %v102 = vpop.f32.mrf.mxu0
  %103 = vdwg.mxu0
  %vm104 = vcmask 31744
  %105 = vst.msk [vmem:[%s3] sm:$0xff] %vm104, %v101
  // Predicated region
  $region14: #{tpu_custom_call.1} parent=0 // pred_check
    _
  $region15: #{tpu_custom_call.1} parent=0 // pred_check_branch
    %107 = sbr.rel (0) target = $region17
  $region16: #{tpu_custom_call.1} parent=0 // pred_region
    _
  $region17: #{tpu_custom_call.1} parent=0 // pred_fallthru
    _
  // Predicated region
  $region18: #{tpu_custom_call.1} parent=0 // pred_check
    _
  $region19: #{tpu_custom_call.1} parent=0 // pred_check_branch
    %109 = sbr.rel (0) target = $region21
  $region20: #{tpu_custom_call.1} parent=0 // pred_region
    _
  $region21: #{tpu_custom_call.1} parent=0 // pred_fallthru
    _

</llo_original>
